<compile_context>
chip_gen: v5e
topology: v5e:2x2
jax: 0.10.0
libtpu: 0.0.40
codegen_flags: <defaults>
</compile_context>

<pallas_src>
import functools

import jax
import jax.numpy as jnp
from jax.experimental import pallas as pl
from jax.experimental.pallas import tpu as pltpu


# Constants smaller than this are returned directly even on the materialize
# path: fixed kernel-launch overhead (~us) dwarfs a few-KiB copy.
_TINY_BYTES = 4096


def _dma_copy_kernel(v_ref, o_ref, sem):
    # Pure HBM->HBM DMA clone of the constant: no VMEM staging, no vreg
    # round-trip, no vector-store pressure.
    cp = pltpu.make_async_copy(v_ref, o_ref, sem)
    cp.start()
    cp.wait()


@functools.lru_cache(maxsize=None)
def _const_copy_call(shape, dtype_name):
    """Build (once per shape/dtype) the pallas_call that clones the constant."""
    return pl.pallas_call(
        _dma_copy_kernel,
        out_shape=jax.ShapeDtypeStruct(shape, jnp.dtype(dtype_name)),
        in_specs=[pl.BlockSpec(memory_space=pl.ANY)],
        out_specs=pl.BlockSpec(memory_space=pl.ANY),
        scratch_shapes=[pltpu.SemaphoreType.DMA(())],
    )


class Always:
    """Pallas port of alphafold2's `Always`: forward(x) -> self.val, x ignored."""

    def __init__(self, val):
        # Keep the constant resident on device once; never re-upload per call.
        self.val = jnp.asarray(val)

    def __call__(self, x, materialize=False):
        # Matches PyTorch semantics: the input is ignored, the stored value is
        # returned.  The default path is kernel-free and traffic-free.
        del x
        if not materialize:
            return self.val
        return self.materialize()

    def materialize(self):
        """Return a fresh buffer holding the constant via the Pallas DMA kernel."""
        v = self.val
        if v.size == 0 or v.size * v.dtype.itemsize < _TINY_BYTES:
            # Scalars / tiny constants: a kernel launch is pure overhead.
            return v
        call = _const_copy_call(tuple(v.shape), v.dtype.name)
        return call(v)


if __name__ == "__main__":
    key = jax.random.PRNGKey(0)
    k_x, k_v1, k_v2 = jax.random.split(key, 3)

    # Input that the module ignores.
    x = jax.random.normal(k_x, (2, 4, 16, 16), dtype=jnp.float32)

    # Tensor-valued constant, large enough to exercise the DMA kernel.
    val = jax.random.normal(k_v1, (256, 128), dtype=jnp.float32)
    module = Always(val)

    # Fast path: returns the stored constant directly (no kernel, no HBM traffic).
    out_fast = jax.block_until_ready(module(x))
    assert out_fast.shape == val.shape and out_fast.dtype == val.dtype
    assert jnp.array_equal(out_fast, val)

    # Kernel path: fresh buffer produced by the Pallas HBM->HBM DMA copy.
    out_kern = jax.block_until_ready(module(x, materialize=True))
    assert out_kern.shape == val.shape and out_kern.dtype == val.dtype
    assert jnp.array_equal(out_kern, val)

    # Non-lane-aligned constant also goes through the DMA kernel unchanged
    # (a full-array DMA has no lane/sublane alignment requirement).
    val2 = jax.random.normal(k_v2, (48, 72), dtype=jnp.float32)
    module2 = Always(val2)
    out2 = jax.block_until_ready(module2(x, materialize=True))
    assert out2.shape == val2.shape and jnp.array_equal(out2, val2)

    # Scalar constant, as alphafold2 typically uses it (e.g. Always(0)).
    zero = Always(0.0)
    out0 = jax.block_until_ready(zero(x))
    assert out0.shape == () and jnp.array_equal(out0, jnp.asarray(0.0, out0.dtype))

    print("KERNEL_OK")
</pallas_src>

<mosaic_0001>
module attributes {stable_mosaic.version = 11 : i64} {
  func.func @_dma_copy_kernel(%arg0: memref<256x128xf32, #tpu.memory_space<any>>, %arg1: memref<256x128xf32, #tpu.memory_space<any>>, %arg2: memref<!tpu.dma_semaphore, #tpu.memory_space<semaphore_mem>>) attributes {dimension_semantics = [], scalar_prefetch = 0 : i64, scratch_operands = 1 : i64, tpu.core_type = #tpu.core_type<tc>} {
    tpu.enqueue_dma source(%arg0 : memref<256x128xf32, #tpu.memory_space<any>>) target(%arg1 : memref<256x128xf32, #tpu.memory_space<any>>) target_semaphore(%arg2 : memref<!tpu.dma_semaphore, #tpu.memory_space<semaphore_mem>>)
    tpu.wait_dma2 semaphore(%arg2 : memref<!tpu.dma_semaphore, #tpu.memory_space<semaphore_mem>>) src(%arg0 : memref<256x128xf32, #tpu.memory_space<any>>) dst(%arg1 : memref<256x128xf32, #tpu.memory_space<any>>)
    return
  }
}

</mosaic_0001>

<llo_original>
// kernel: tpu_custom_call.1
$region0: #{tpu_custom_call.1}
  #allocation0 [shape = 'u32[]', space=smem, size = 0x4, offset = 0x4, fixed_abs, tag = 'smem constant byte address 0x4 - core index']
  #allocation1 [shape = 'u32[72,128]{1,0:T(1,128)}', space=vmem, size = 0x9000, scoped, tag = 'internal scratch']
  #allocation2 [shape = 's32[1]{0}', space=sflag, size = 0x4, scoped, tag = 'scratch operand']
  #allocation3 [shape = 's32[]', space=sflag, size = 0x4, offset = 0, fixed_abs, tag = 'sflag constant byte address 0x0 - dummy sync flag']
  #allocation4 [shape = 'u32[0]{0}', space=smem, size = 0, offset = 0, fixed_abs, tag = 'smem constant byte address 0x0 - null']
  %s0 = inlined_call_operand.hbm [shape: f32[256,128], index: 0, kind: input, shape index: {}]
  %s1 = inlined_call_operand.hbm [shape: f32[256,128], index: 1, kind: output, shape index: {}]
  %s2 = sld [smem:[#allocation0]]
  $region2: #{tpu_custom_call.1} parent=0
    _
  %s4 = ssub.s32 1, %s2
  %s5 = scalar_select 0, %s4, %s2
  %s7 = sshll.u32 1, 14
  %s8 = sxor.u32 4294967295, %s7
  %s10 = sshll.u32 %s0, 4
  %s11 = int_to_ptr.hbm [resolvable:$true] %s10
  %s12 = sshll.u32 %s1, 4
  %s13 = int_to_ptr.hbm [resolvable:$true] %s12
  %16 = dma.general %s11, 4096, %s13, [#allocation2], [#allocation3], [#allocation4], 0, 0
  %s17 = smul.u32 256, 1
  %s18 = sshll.u32 %s17, 4
  %19 = dma.done [#allocation2], %s18
  %20 = vsyncmov [#allocation2]
  %s21 = vpop.sfrf %20
  %p22 = scmp.eq.s32.totalorder %s21, 0
  %p23 = pneg %p22
  %25 = shalt.err (%p23)

</llo_original>
